<compile_context>
chip_gen: v7x
topology: tpu7x:2x2x1
jax: 0.10.0
libtpu: 0.0.40
codegen_flags: <defaults>
</compile_context>

<pallas_src>
import functools

import jax
import jax.numpy as jnp
from jax.experimental import pallas as pl
from jax.experimental.pallas import tpu as pltpu

_LANE = 128
_VMEM_LIMIT = 32 * 1024 * 1024       # safe on v5e/v6e (128 MiB) and v7x (64 MiB)
_BLOCK_BUDGET = 20 * 1024 * 1024     # double-buffered input blocks stay under this


def _round_up(x, m):
    return (x + m - 1) // m * m


def _pick_batch_tile(b):
    # Batch grid axis is "parallel" -> shard across TensorCores (v7x has 2/chip).
    return 8 if b % 8 == 0 else b


def _pick_seq_tile(s, tb, hp, in_bytes):
    """Largest seq tile dividing S whose double-buffered blocks fit the budget."""
    for ts in (1024, 512, 384, 256, 128, 64, 32, 16, 8):
        if s % ts:
            continue
        hid = 2 * tb * ts * hp * in_bytes          # hidden block, double-buffered
        msk = 2 * tb * ts * _LANE * 4              # (tB,tS,1) lane-pads to 128 in VMEM
        if hid + msk <= _BLOCK_BUDGET:
            return ts
    return s                                       # fall back: whole sequence per step


def _mean_head_kernel(h_ref, m_ref, *rest, use_projection, normalize):
    """grid = (B/tB, S/tS); seq axis accumulates into VMEM scratch."""
    if use_projection:
        w_ref, b_ref, out_ref, acc_ref, cnt_ref = rest
    else:
        w_ref = b_ref = None
        out_ref, acc_ref, cnt_ref = rest

    s = pl.program_id(1)

    @pl.when(s == 0)
    def _init():
        acc_ref[...] = jnp.zeros_like(acc_ref)
        cnt_ref[...] = jnp.zeros_like(cnt_ref)

    h = h_ref[...].astype(jnp.float32)      # (tB, tS, Hp)
    m = m_ref[...].astype(jnp.float32)      # (tB, tS, 1)  (pre-shaped in wrapper)

    acc_ref[...] += jnp.sum(h * m, axis=1)  # masked partial sum   (tB, Hp)
    cnt_ref[...] += jnp.sum(m, axis=1)      # valid-token count    (tB, 1)

    @pl.when(s == pl.num_programs(1) - 1)
    def _finalize():
        cnt = jnp.maximum(cnt_ref[...], 1e-9)        # guard fully-padded rows
        v = acc_ref[...] / cnt                       # masked mean  (tB, Hp)
        if use_projection:
            v = jnp.dot(v, w_ref[...].astype(jnp.float32),
                        preferred_element_type=jnp.float32) + b_ref[...]
        if normalize:
            v = v / jnp.sqrt(jnp.sum(v * v, axis=1, keepdims=True) + 1e-12)
        out_ref[...] = v.astype(out_ref.dtype)


def _cls_head_kernel(v_ref, *rest, use_projection, normalize):
    """grid = (B/tB,); input is the pre-sliced CLS row (tB, Hp)."""
    if use_projection:
        w_ref, b_ref, out_ref = rest
    else:
        w_ref = b_ref = None
        (out_ref,) = rest

    v = v_ref[...].astype(jnp.float32)
    if use_projection:
        v = jnp.dot(v, w_ref[...].astype(jnp.float32),
                    preferred_element_type=jnp.float32) + b_ref[...]
    if normalize:
        v = v / jnp.sqrt(jnp.sum(v * v, axis=1, keepdims=True) + 1e-12)
    out_ref[...] = v.astype(out_ref.dtype)


def embedding_head(last_hidden_state, attention_mask=None, proj_weight=None,
                   proj_bias=None, *, pooling='mean', normalize=True):
    """Pallas implementation of EmbeddingModel.forward post-transformer head."""
    if pooling not in ('mean', 'cls'):
        # TODO(synk): 'pooler' pooling needs the transformer's internal pooler
        # head (dense + tanh on CLS), which lives inside the HF model.
        raise ValueError(f"unsupported pooling {pooling!r}")

    B, S, H = last_hidden_state.shape
    Hp = _round_up(H, _LANE)      # lane-pad hidden (no-op for real roberta H=768)
    use_projection = proj_weight is not None

    if use_projection:
        d = proj_weight.shape[0]
        d_pad = _round_up(d, _LANE)           # lane-dense output stores
        # Pre-transpose (PyTorch Linear stores (d, H)) and zero-pad once in the
        # wrapper so the kernel feeds the MXU without an in-kernel transpose.
        wt = jnp.zeros((Hp, d_pad), jnp.float32).at[:H, :d].set(
            proj_weight.T.astype(jnp.float32))
        bb = jnp.zeros((1, d_pad), jnp.float32).at[0, :d].set(
            proj_bias.astype(jnp.float32))
        d_out = d
    else:
        wt = bb = None
        d_pad = Hp
        d_out = H

    tB = _pick_batch_tile(B)
    kernel_kwargs = dict(use_projection=use_projection, normalize=normalize)

    if pooling == 'cls':
        # Fetch only token 0: HBM traffic drops by a factor of S.
        v0 = last_hidden_state[:, 0, :]
        if Hp != H:
            v0 = jnp.pad(v0, ((0, 0), (0, Hp - H)))
        inputs = [v0]
        in_specs = [pl.BlockSpec((tB, Hp), lambda b: (b, 0))]
        if use_projection:
            inputs += [wt, bb]
            in_specs += [pl.BlockSpec((Hp, d_pad), lambda b: (0, 0)),
                         pl.BlockSpec((1, d_pad), lambda b: (0, 0))]
        out_full = pl.pallas_call(
            functools.partial(_cls_head_kernel, **kernel_kwargs),
            out_shape=jax.ShapeDtypeStruct((B, d_pad), jnp.float32),
            grid_spec=pltpu.PrefetchScalarGridSpec(
                num_scalar_prefetch=0,
                grid=(B // tB,),
                in_specs=in_specs,
                out_specs=pl.BlockSpec((tB, d_pad), lambda b: (b, 0))),
            compiler_params=pltpu.CompilerParams(
                dimension_semantics=("parallel",),
                vmem_limit_bytes=_VMEM_LIMIT),
        )(*inputs)
        return out_full[:, :d_out]

    # ---------------- mean pooling: pipelined over (batch, seq) --------------
    if attention_mask is None:
        raise ValueError("mean pooling requires attention_mask")

    in_bytes = jnp.dtype(last_hidden_state.dtype).itemsize
    tS = _pick_seq_tile(S, tB, Hp, in_bytes)

    h = last_hidden_state
    if Hp != H:
        # Only hit for toy hidden sizes; real transformer widths are 128-aligned.
        h = jnp.pad(h, ((0, 0), (0, 0), (0, Hp - H)))
    # Pre-shape the mask to (B, S, 1) so broadcasting against (tB, tS, Hp)
    # needs no in-kernel relayout (lane broadcast only).
    m3 = attention_mask[:, :, None]

    inputs = [h, m3]
    in_specs = [pl.BlockSpec((tB, tS, Hp), lambda b, s: (b, s, 0)),
                pl.BlockSpec((tB, tS, 1), lambda b, s: (b, s, 0))]
    if use_projection:
        inputs += [wt, bb]
        # Constant index_map -> weight/bias DMA'd once, not per grid step.
        in_specs += [pl.BlockSpec((Hp, d_pad), lambda b, s: (0, 0)),
                     pl.BlockSpec((1, d_pad), lambda b, s: (0, 0))]

    out_full = pl.pallas_call(
        functools.partial(_mean_head_kernel, **kernel_kwargs),
        out_shape=jax.ShapeDtypeStruct((B, d_pad), jnp.float32),
        grid_spec=pltpu.PrefetchScalarGridSpec(
            num_scalar_prefetch=0,
            grid=(B // tB, S // tS),
            in_specs=in_specs,
            out_specs=pl.BlockSpec((tB, d_pad), lambda b, s: (b, 0)),
            scratch_shapes=[pltpu.VMEM((tB, Hp), jnp.float32),   # pooled sum
                            pltpu.VMEM((tB, 1), jnp.float32)]),  # mask count
        compiler_params=pltpu.CompilerParams(
            dimension_semantics=("parallel", "arbitrary"),
            vmem_limit_bytes=_VMEM_LIMIT),
    )(*inputs)
    return out_full[:, :d_out]


def _reference(last_hidden_state, attention_mask, proj_weight, proj_bias,
               pooling, normalize):
    h = last_hidden_state.astype(jnp.float32)
    if pooling == 'mean':
        m = attention_mask.astype(jnp.float32)
        v = (h * m[:, :, None]).sum(axis=1) / m.sum(axis=1)[:, None]
    else:
        v = h[:, 0, :]
    if proj_weight is not None:
        v = v @ proj_weight.T.astype(jnp.float32) + proj_bias.astype(jnp.float32)
    if normalize:
        v = v / jnp.sqrt((v ** 2).sum(axis=1)[:, None])
    return v


if __name__ == "__main__":
    key = jax.random.PRNGKey(0)
    k_h, k_w, k_h2, k_w2 = jax.random.split(key, 4)

    # MXU f32 matmuls use bf16 passes at default precision, so compare at ~1e-3.
    TOL = dict(atol=2e-3, rtol=2e-3)

    # ---- small shapes consistent with the module's forward ----
    B, S, H, D = 2, 8, 32, 16   # batch, seq, transformer hidden, projection d
    h = jax.random.normal(k_h, (B, S, H), dtype=jnp.float32)
    mask = jnp.array([[1, 1, 1, 1, 1, 0, 0, 0],
                      [1, 1, 1, 1, 1, 1, 1, 1]], dtype=jnp.float32)
    w = jax.random.normal(k_w, (D, H), dtype=jnp.float32)   # nn.init.normal_
    bias = jnp.zeros((D,), jnp.float32)                     # nn.init.constant_(0)

    # mean pooling + projection + normalize
    out = jax.block_until_ready(
        embedding_head(h, mask, w, bias, pooling='mean', normalize=True))
    ref = _reference(h, mask, w, bias, 'mean', True)
    assert out.shape == (B, D)
    assert jnp.allclose(out, ref, **TOL), "mean+proj mismatch vs reference"

    # cls pooling, module defaults (no projection)
    out_cls = jax.block_until_ready(
        embedding_head(h, mask, pooling='cls', normalize=True))
    ref_cls = _reference(h, mask, None, None, 'cls', True)
    assert out_cls.shape == (B, H)
    assert jnp.allclose(out_cls, ref_cls, **TOL), "cls mismatch vs reference"

    # larger case: exercises batch-parallel grid + multi-step seq accumulation
    B2, S2, H2, D2 = 16, 512, 128, 64
    h2 = jax.random.normal(k_h2, (B2, S2, H2), dtype=jnp.float32)
    lens = (jnp.arange(B2) % 5 + 1) * (S2 // 8)
    mask2 = (jnp.arange(S2)[None, :] < lens[:, None]).astype(jnp.float32)
    w2 = jax.random.normal(k_w2, (D2, H2), dtype=jnp.float32)
    b2 = jnp.zeros((D2,), jnp.float32)
    out2 = jax.block_until_ready(
        embedding_head(h2, mask2, w2, b2, pooling='mean', normalize=True))
    ref2 = _reference(h2, mask2, w2, b2, 'mean', True)
    assert out2.shape == (B2, D2)
    assert jnp.allclose(out2, ref2, **TOL), "tiled mean+proj mismatch vs reference"

    # bf16 hidden states: dtype passthrough (half the HBM bytes), f32 accumulate
    h2b = h2.astype(jnp.bfloat16)
    out3 = jax.block_until_ready(
        embedding_head(h2b, mask2, w2, b2, pooling='mean', normalize=True))
    ref3 = _reference(h2b, mask2, w2, b2, 'mean', True)
    assert out3.shape == (B2, D2)
    assert jnp.allclose(out3, ref3, **TOL), "bf16 mean+proj mismatch vs reference"

    print("KERNEL_OK")
</pallas_src>

<mosaic_0001>
module attributes {stable_mosaic.version = 11 : i64} {
  func.func @_mean_head_kernel(%arg0: i32, %arg1: i32, %arg2: memref<2x8x128xf32, #tpu.memory_space<vmem>>, %arg3: memref<2x8x1xf32, #tpu.memory_space<vmem>>, %arg4: memref<128x128xf32, #tpu.memory_space<vmem>>, %arg5: memref<1x128xf32, #tpu.memory_space<vmem>>, %arg6: memref<2x128xf32, #tpu.memory_space<vmem>>, %arg7: memref<2x128xf32, #tpu.memory_space<vmem>>, %arg8: memref<2x1xf32, #tpu.memory_space<vmem>>) attributes {dimension_semantics = [#tpu.dimension_semantics<parallel>, #tpu.dimension_semantics<arbitrary>], iteration_bounds = array<i64: 1, 1>, scalar_prefetch = 0 : i64, scratch_operands = 2 : i64, tpu.core_type = #tpu.core_type<tc>, window_params = [{transform_indices = @transform_0, window_bounds = array<i64: 2, 8, 128>}, {transform_indices = @transform_1, window_bounds = array<i64: 2, 8, 1>}, {pipeline_mode = #tpu.pipeline_mode<synchronous>, transform_indices = @transform_2, window_bounds = array<i64: 128, 128>}, {pipeline_mode = #tpu.pipeline_mode<synchronous>, transform_indices = @transform_3, window_bounds = array<i64: 1, 128>}, {transform_indices = @transform_4, window_bounds = array<i64: 2, 128>}]} {
    %c0_i32 = arith.constant 0 : i32
    %0 = arith.cmpi eq, %arg1, %c0_i32 : i32
    %1 = arith.extui %0 : i1 to i32
    %c0_i32_0 = arith.constant 0 : i32
    %2 = arith.cmpi ne, %1, %c0_i32_0 : i32
    scf.if %2 {
      %cst_17 = arith.constant 0.000000e+00 : f32
      %18 = vector.broadcast %cst_17 : f32 to vector<2x128xf32>
      %c0_18 = arith.constant 0 : index
      %c0_19 = arith.constant 0 : index
      %19 = vector.load %arg7[%c0_18, %c0_19] : memref<2x128xf32, #tpu.memory_space<vmem>>, vector<2x128xf32>
      tpu.vector_store %arg7[%c0_18, %c0_19], %18 {strides = array<i32>} : memref<2x128xf32, #tpu.memory_space<vmem>>, vector<2x128xf32>,
      %cst_20 = arith.constant 0.000000e+00 : f32
      %20 = vector.broadcast %cst_20 : f32 to vector<2x1xf32>
      %c0_21 = arith.constant 0 : index
      %c0_22 = arith.constant 0 : index
      %21 = vector.load %arg8[%c0_21, %c0_22] : memref<2x1xf32, #tpu.memory_space<vmem>>, vector<2x1xf32>
      tpu.vector_store %arg8[%c0_21, %c0_22], %20 {strides = array<i32>} : memref<2x1xf32, #tpu.memory_space<vmem>>, vector<2x1xf32>,
    } else {
    }
    %c0 = arith.constant 0 : index
    %c0_1 = arith.constant 0 : index
    %c0_2 = arith.constant 0 : index
    %3 = vector.load %arg2[%c0, %c0_1, %c0_2] : memref<2x8x128xf32, #tpu.memory_space<vmem>>, vector<2x8x128xf32>
    %c0_3 = arith.constant 0 : index
    %c0_4 = arith.constant 0 : index
    %c0_5 = arith.constant 0 : index
    %4 = vector.load %arg3[%c0_3, %c0_4, %c0_5] : memref<2x8x1xf32, #tpu.memory_space<vmem>>, vector<2x8x1xf32>
    %c0_6 = arith.constant 0 : index
    %c0_7 = arith.constant 0 : index
    %5 = vector.load %arg7[%c0_6, %c0_7] : memref<2x128xf32, #tpu.memory_space<vmem>>, vector<2x128xf32>
    %6 = vector.broadcast %4 : vector<2x8x1xf32> to vector<2x8x128xf32>
    %7 = arith.mulf %3, %6 : vector<2x8x128xf32>
    %cst = arith.constant dense<0.000000e+00> : vector<2x128xf32>
    %8 = vector.multi_reduction <add>, %7, %cst [1] : vector<2x8x128xf32> to vector<2x128xf32>
    %9 = arith.addf %5, %8 : vector<2x128xf32>
    %c0_8 = arith.constant 0 : index
    %c0_9 = arith.constant 0 : index
    %10 = vector.load %arg7[%c0_8, %c0_9] : memref<2x128xf32, #tpu.memory_space<vmem>>, vector<2x128xf32>
    tpu.vector_store %arg7[%c0_8, %c0_9], %9 {strides = array<i32>} : memref<2x128xf32, #tpu.memory_space<vmem>>, vector<2x128xf32>,
    %c0_10 = arith.constant 0 : index
    %c0_11 = arith.constant 0 : index
    %11 = vector.load %arg8[%c0_10, %c0_11] : memref<2x1xf32, #tpu.memory_space<vmem>>, vector<2x1xf32>
    %cst_12 = arith.constant dense<0.000000e+00> : vector<2x1xf32>
    %12 = vector.multi_reduction <add>, %4, %cst_12 [1] : vector<2x8x1xf32> to vector<2x1xf32>
    %13 = arith.addf %11, %12 : vector<2x1xf32>
    %c0_13 = arith.constant 0 : index
    %c0_14 = arith.constant 0 : index
    %14 = vector.load %arg8[%c0_13, %c0_14] : memref<2x1xf32, #tpu.memory_space<vmem>>, vector<2x1xf32>
    tpu.vector_store %arg8[%c0_13, %c0_14], %13 {strides = array<i32>} : memref<2x1xf32, #tpu.memory_space<vmem>>, vector<2x1xf32>,
    %c0_i32_15 = arith.constant 0 : i32
    %15 = arith.cmpi eq, %arg1, %c0_i32_15 : i32
    %16 = arith.extui %15 : i1 to i32
    %c0_i32_16 = arith.constant 0 : i32
    %17 = arith.cmpi ne, %16, %c0_i32_16 : i32
    scf.if %17 {
      %c0_17 = arith.constant 0 : index
      %c0_18 = arith.constant 0 : index
      %18 = vector.load %arg8[%c0_17, %c0_18] : memref<2x1xf32, #tpu.memory_space<vmem>>, vector<2x1xf32>
      %cst_19 = arith.constant 9.99999971E-10 : f32
      %19 = vector.broadcast %cst_19 : f32 to vector<2x1xf32>
      %20 = arith.maximumf %18, %19 : vector<2x1xf32>
      %c0_20 = arith.constant 0 : index
      %c0_21 = arith.constant 0 : index
      %21 = vector.load %arg7[%c0_20, %c0_21] : memref<2x128xf32, #tpu.memory_space<vmem>>, vector<2x128xf32>
      %22 = vector.broadcast %20 : vector<2x1xf32> to vector<2x128xf32>
      %23 = arith.divf %21, %22 : vector<2x128xf32>
      %c0_22 = arith.constant 0 : index
      %c0_23 = arith.constant 0 : index
      %24 = vector.load %arg4[%c0_22, %c0_23] : memref<128x128xf32, #tpu.memory_space<vmem>>, vector<128x128xf32>
      %cst_24 = arith.constant dense<0.000000e+00> : vector<2x128xf32>
      %25 = tpu.matmul %23, %24, %cst_24 {dimension_numbers = #tpu.dot_dimension_numbers<[1], [0], [0], [1], [0, 0, 1, 1], [], []>} : vector<2x128xf32>, vector<128x128xf32>, vector<2x128xf32> -> vector<2x128xf32>
      %c0_25 = arith.constant 0 : index
      %c0_26 = arith.constant 0 : index
      %26 = vector.load %arg5[%c0_25, %c0_26] : memref<1x128xf32, #tpu.memory_space<vmem>>, vector<1x128xf32>
      %27 = vector.broadcast %26 : vector<1x128xf32> to vector<2x128xf32>
      %28 = arith.addf %25, %27 : vector<2x128xf32>
      %29 = arith.mulf %28, %28 : vector<2x128xf32>
      %cst_27 = arith.constant dense<0.000000e+00> : vector<2xf32>
      %30 = vector.multi_reduction <add>, %29, %cst_27 [1] : vector<2x128xf32> to vector<2xf32>
      %31 = vector.shape_cast %30 : vector<2xf32> to vector<2x1xf32>
      %cst_28 = arith.constant 9.99999996E-13 : f32
      %32 = vector.broadcast %cst_28 : f32 to vector<2x1xf32>
      %33 = arith.addf %31, %32 : vector<2x1xf32>
      %34 = math.sqrt %33 : vector<2x1xf32>
      %35 = vector.broadcast %34 : vector<2x1xf32> to vector<2x128xf32>
      %36 = arith.divf %28, %35 : vector<2x128xf32>
      %c0_29 = arith.constant 0 : index
      %c0_30 = arith.constant 0 : index
      %37 = vector.load %arg6[%c0_29, %c0_30] : memref<2x128xf32, #tpu.memory_space<vmem>>, vector<2x128xf32>
      tpu.vector_store %arg6[%c0_29, %c0_30], %36 {strides = array<i32>} : memref<2x128xf32, #tpu.memory_space<vmem>>, vector<2x128xf32>,
    } else {
    }
    return
  }
  func.func @transform_0(%arg0: i32, %arg1: i32) -> (i32, i32, i32) {
    %c0_i32 = arith.constant 0 : i32
    %c0_i32_0 = arith.constant 0 : i32
    return %arg0, %arg1, %c0_i32 : i32, i32, i32
  }
  func.func @transform_1(%arg0: i32, %arg1: i32) -> (i32, i32, i32) {
    %c0_i32 = arith.constant 0 : i32
    %c0_i32_0 = arith.constant 0 : i32
    return %arg0, %arg1, %c0_i32 : i32, i32, i32
  }
  func.func @transform_2(%arg0: i32, %arg1: i32) -> (i32, i32) {
    %c0_i32 = arith.constant 0 : i32
    %c0_i32_0 = arith.constant 0 : i32
    %c0_i32_1 = arith.constant 0 : i32
    return %c0_i32, %c0_i32_0 : i32, i32
  }
  func.func @transform_3(%arg0: i32, %arg1: i32) -> (i32, i32) {
    %c0_i32 = arith.constant 0 : i32
    %c0_i32_0 = arith.constant 0 : i32
    %c0_i32_1 = arith.constant 0 : i32
    return %c0_i32, %c0_i32_0 : i32, i32
  }
  func.func @transform_4(%arg0: i32, %arg1: i32) -> (i32, i32) {
    %c0_i32 = arith.constant 0 : i32
    %c0_i32_0 = arith.constant 0 : i32
    return %arg0, %c0_i32 : i32, i32
  }
}

</mosaic_0001>

<llo_original>
// kernel: tpu_custom_call.1
$region0: #{tpu_custom_call.1}
  #allocation0 [shape = 'u32[]', space=smem, size = 0x4, offset = 0x4, fixed_abs, tag = 'smem constant byte address 0x4 - core index']
  #allocation1 [shape = 'u32[144,128]{1,0:T(1,128)}', space=vmem, size = 0x12000, scoped, tag = 'internal scratch']
  #allocation2 [shape = 'f32[2,128]{1,0:T(2,128)}', space=vmem, size = 0x400, scoped, tag = 'scratch operand']
  #allocation3 [shape = 'f32[2,1]{1,0:T(2,128)}', space=vmem, size = 0x400, scoped, tag = 'scratch operand']
  %s0 = inlined_call_operand.vmem [shape: f32[2,8,128], index: 0, kind: input, shape index: {}]
  %s1 = inlined_call_operand.vmem [shape: f32[2,8,1], index: 1, kind: input, shape index: {}]
  %s2 = inlined_call_operand.hbm [shape: f32[128,128], index: 2, kind: input, shape index: {}]
  %s3 = inlined_call_operand.vmem [shape: f32[1,128], index: 3, kind: input, shape index: {}]
  %s4 = inlined_call_operand.hbm [shape: f32[2,128], index: 4, kind: output, shape index: {}]
  %s5 = sld [smem:[#allocation0]]
  $region38: #{tpu_custom_call.1} parent=0
    _
  %s7 = ssub.s32 1, %s5
  %s8 = scalar_select 0, %s7, %s5
  $region1: #{tpu_custom_call.1} parent=0
    #allocation4 [shape = 'u8[65536]{0}', space=vmem, size = 0x10000, scoped, tag = 'input window, operand 2, single buffered']
    #allocation5 [shape = 's32[1]{0}', space=sflag, size = 0x4, scoped, tag = 'scoped memory for tpu_custom_call.1']
    #allocation6 [shape = 's32[1]{0}', space=sflag, size = 0x4, scoped, tag = 'scoped memory for tpu_custom_call.1']
    #allocation7 [shape = 'u8[1024]{0}', space=vmem, size = 0x400, scoped, tag = 'output window, operand 0, single buffered']
    %9 = vsyncpa [#allocation5], 0
    %10 = vsyncpa [#allocation6], 0
    // Predicated region
    $region2: #{tpu_custom_call.1} parent=1 // pred_check
      _
    $region3: #{tpu_custom_call.1} parent=1 // pred_check_branch
      %12 = sbr.rel (0) target = $region5
    $region4: #{tpu_custom_call.1} parent=1 // pred_region
      _
    $region5: #{tpu_custom_call.1} parent=1 // pred_fallthru
      _
    // Predicated region
    $region6: #{tpu_custom_call.1} parent=1 // pred_check
      _
    $region7: #{tpu_custom_call.1} parent=1 // pred_check_branch
      %14 = sbr.rel (0) target = $region9
    $region8: #{tpu_custom_call.1} parent=1 // pred_region
      _
    $region9: #{tpu_custom_call.1} parent=1 // pred_fallthru
      _
    // Predicated region
    $region10: #{tpu_custom_call.1} parent=1 // pred_check
      _
    $region11: #{tpu_custom_call.1} parent=1 // pred_check_branch
      %16 = sbr.rel (0) target = $region13
    $region12: #{tpu_custom_call.1} parent=1 // pred_region
      %s18 = ssub.s32 2048, 2048
      %19 = vsyncadd [#allocation5], %s18
      %s20 = sshll.u32 [#allocation4], 4
      %s21 = int_to_ptr.vmem [resolvable:$true] %s20
      %26 = dma.hbm_to_vmem [thread:$0]  %s2, 2048, %s21, [#allocation5], 128, 128, 8
    $region13: #{tpu_custom_call.1} parent=1 // pred_fallthru
      _
    // Predicated region
    $region14: #{tpu_custom_call.1} parent=1 // pred_check
      _
    $region15: #{tpu_custom_call.1} parent=1 // pred_check_branch
      %28 = sbr.rel (0) target = $region17
    $region16: #{tpu_custom_call.1} parent=1 // pred_region
      _
    $region17: #{tpu_custom_call.1} parent=1 // pred_fallthru
      _
    // Predicated region
    $region18: #{tpu_custom_call.1} parent=1 // pred_check
      _
    $region19: #{tpu_custom_call.1} parent=1 // pred_check_branch
      %30 = sbr.rel (0) target = $region21
    $region20: #{tpu_custom_call.1} parent=1 // pred_region
      %31 = dma.done [#allocation5], 2048
    $region21: #{tpu_custom_call.1} parent=1 // pred_fallthru
      _
    %p32 = scmp.eq.s32.totalorder 0, 0
    // Predicated region
    $region22: #{tpu_custom_call.1} parent=1 // pred_check
      %p33 = pneg %p32
    $region23: #{tpu_custom_call.1} parent=1 // pred_check_branch
      %35 = sbr.rel (%p33) target = $region25
    $region24: #{tpu_custom_call.1} parent=1 // pred_region
      %36 = vst [vmem:[#allocation2] sm:$0x3] 0.0
      %vm37 = vcmask 1024
      %38 = vst.msk [vmem:[#allocation3] sm:$0x3] %vm37, 0.0
    $region25: #{tpu_custom_call.1} parent=1 // pred_fallthru
      _
    %v39 = vld [vmem:[%s0] sm:$0xff]
    %v40 = vld [vmem:[%s0 + $0x8] sm:$0xff]
    %v41 = vld [vmem:[%s1] sm:$0xff]
    %v42 = vld [vmem:[%s1 + $0x8] sm:$0xff]
    %v43 = vld [vmem:[#allocation2] sm:$0x3]
    %45 = vset.pattern.permute.xlu0 0
    %46 = vperm.xlu0 %45, %v41
    %v47 = vpop.permute.xlu0 %46
    %50 = vset.pattern.permute.xlu0 0
    %51 = vperm.xlu0 %50, %v42
    %v52 = vpop.permute.xlu0 %51
    %v54 = vmul.f32 %v39, %v47
    %v55 = vmul.f32 %v40, %v52
    %v56 = vrot.slane %v54, 4
    %v57 = vadd.f32 %v54, %v56
    %v58 = vrot.slane %v57, 2
    %v59 = vadd.f32 %v57, %v58
    %v60 = vrot.slane %v59, 1
    %v61 = vadd.f32 %v59, %v60
    %v62 = vrot.slane %v55, 4
    %v63 = vadd.f32 %v55, %v62
    %v64 = vrot.slane %v63, 2
    %v65 = vadd.f32 %v63, %v64
    %v66 = vrot.slane %v65, 1
    %v67 = vadd.f32 %v65, %v66
    %vm70 = vcmask 1041409
    %v71 = vsel %vm70, %v67, %v61
    %v73 = vadd.f32 %v43, %v71
    %74 = vst [vmem:[#allocation2] sm:$0x3] %v73
    %v75 = vld [vmem:[#allocation3] sm:$0x3]
    %vm76 = vcmask 7168
    %v77 = vsel %vm76, %v41, 0.0
    %v78 = vrot.slane %v77, 4
    %v79 = vadd.f32 %v77, %v78
    %v80 = vrot.slane %v79, 2
    %v81 = vadd.f32 %v79, %v80
    %v82 = vrot.slane %v81, 1
    %v83 = vadd.f32 %v81, %v82
    %v84 = vsel %vm76, %v42, 0.0
    %v85 = vrot.slane %v84, 4
    %v86 = vadd.f32 %v84, %v85
    %v87 = vrot.slane %v86, 2
    %v88 = vadd.f32 %v86, %v87
    %v89 = vrot.slane %v88, 1
    %v90 = vadd.f32 %v88, %v89
    %v93 = vsel %vm70, %v90, %v83
    %v95 = vadd.f32 %v75, %v93
    %vm96 = vcmask 1024
    %97 = vst.msk [vmem:[#allocation3] sm:$0x3] %vm96, %v95
    // Predicated region
    $region26: #{tpu_custom_call.1} parent=1 // pred_check
      %p98 = pneg %p32
    $region27: #{tpu_custom_call.1} parent=1 // pred_check_branch
      %100 = sbr.rel (%p98) target = $region29
    $region28: #{tpu_custom_call.1} parent=1 // pred_region
      %v101 = vld [vmem:[#allocation3] sm:$0x3]
      %v102 = vmax.f32 %v101, 1e-09
      %v103 = vld [vmem:[#allocation2] sm:$0x3]
      %105 = vset.pattern.permute.xlu0 0
      %106 = vperm.xlu0 %105, %v102
      %v107 = vpop.permute.xlu0 %106
      %v109 = vrcp.pop %v107
      %v110 = vmul.f32 %v103, %v109
      %v111 = vld [vmem:[#allocation4] sm:$0xff]
      %v112 = vld [vmem:[#allocation4 + $0x8] sm:$0xff]
      %v113 = vld [vmem:[#allocation4 + $0x10] sm:$0xff]
      %v114 = vld [vmem:[#allocation4 + $0x18] sm:$0xff]
      %v115 = vld [vmem:[#allocation4 + $0x20] sm:$0xff]
      %v116 = vld [vmem:[#allocation4 + $0x28] sm:$0xff]
      %v117 = vld [vmem:[#allocation4 + $0x30] sm:$0xff]
      %v118 = vld [vmem:[#allocation4 + $0x38] sm:$0xff]
      %v119 = vld [vmem:[#allocation4 + $0x40] sm:$0xff]
      %v120 = vld [vmem:[#allocation4 + $0x48] sm:$0xff]
      %v121 = vld [vmem:[#allocation4 + $0x50] sm:$0xff]
      %v122 = vld [vmem:[#allocation4 + $0x58] sm:$0xff]
      %v123 = vld [vmem:[#allocation4 + $0x60] sm:$0xff]
      %v124 = vld [vmem:[#allocation4 + $0x68] sm:$0xff]
      %v125 = vld [vmem:[#allocation4 + $0x70] sm:$0xff]
      %v126 = vld [vmem:[#allocation4 + $0x78] sm:$0xff]
      %v127 = vld [vmem:[%s3] sm:$0x1]
      %v129 = vlaneseq
      %v130 = vshrl.u32 %v129, 7
      %v131 = vsub.s32 0, %v130
      %v132 = vrot.slane %v127, %v131
      %134 = vmatprep.subr.mxu0 0.0
      %135 = vmatpush1.msra.mxu0 %v111
      %136 = vmatprep.subr.mxu0 0.0
      %137 = vmatpush1.msra.mxu0 %v112
      %138 = vmatprep.subr.mxu0 0.0
      %139 = vmatpush1.msra.mxu0 %v113
      %140 = vmatprep.subr.mxu0 0.0
      %141 = vmatpush1.msra.mxu0 %v114
      %142 = vmatprep.subr.mxu0 0.0
      %143 = vmatpush1.msra.mxu0 %v115
      %144 = vmatprep.subr.mxu0 0.0
      %145 = vmatpush1.msra.mxu0 %v116
      %146 = vmatprep.subr.mxu0 0.0
      %147 = vmatpush1.msra.mxu0 %v117
      %148 = vmatprep.subr.mxu0 0.0
      %149 = vmatpush1.msra.mxu0 %v118
      %150 = vmatprep.subr.mxu0 0.0
      %151 = vmatpush1.msra.mxu0 %v119
      %152 = vmatprep.subr.mxu0 0.0
      %153 = vmatpush1.msra.mxu0 %v120
      %154 = vmatprep.subr.mxu0 0.0
      %155 = vmatpush1.msra.mxu0 %v121
      %156 = vmatprep.subr.mxu0 0.0
      %157 = vmatpush1.msra.mxu0 %v122
      %158 = vmatprep.subr.mxu0 0.0
      %159 = vmatpush1.msra.mxu0 %v123
      %160 = vmatprep.subr.mxu0 0.0
      %161 = vmatpush1.msra.mxu0 %v124
      %162 = vmatprep.subr.mxu0 0.0
      %163 = vmatpush1.msra.mxu0 %v125
      %164 = vmatprep.subr.mxu0 0.0
      %165 = vmatpush1.msra.mxu0 %v126
      %166 = vmatprep.subr.mxu0 0.0
      %167 = vmatpush1.msra.mxu0 0.0
      %168 = vmatprep.subr.mxu0 0.0
      %169 = vmatpush1.msra.mxu0 0.0
      %170 = vmatprep.subr.mxu0 0.0
      %171 = vmatpush1.msra.mxu0 0.0
      %172 = vmatprep.subr.mxu0 0.0
      %173 = vmatpush1.msra.mxu0 0.0
      %174 = vmatprep.subr.mxu0 0.0
      %175 = vmatpush1.msra.mxu0 0.0
      %176 = vmatprep.subr.mxu0 0.0
      %177 = vmatpush1.msra.mxu0 0.0
      %178 = vmatprep.subr.mxu0 0.0
      %179 = vmatpush1.msra.mxu0 0.0
      %180 = vmatprep.subr.mxu0 0.0
      %181 = vmatpush1.msra.mxu0 0.0
      %182 = vmatprep.subr.mxu0 0.0
      %183 = vmatpush1.msra.mxu0 0.0
      %184 = vmatprep.subr.mxu0 0.0
      %185 = vmatpush1.msra.mxu0 0.0
      %186 = vmatprep.subr.mxu0 0.0
      %187 = vmatpush1.msra.mxu0 0.0
      %188 = vmatprep.subr.mxu0 0.0
      %189 = vmatpush1.msra.mxu0 0.0
      %190 = vmatprep.subr.mxu0 0.0
      %191 = vmatpush1.msra.mxu0 0.0
      %192 = vmatprep.subr.mxu0 0.0
      %193 = vmatpush1.msra.mxu0 0.0
      %194 = vmatprep.subr.mxu0 0.0
      %195 = vmatpush1.msra.mxu0 0.0
      %196 = vmatprep.subr.mxu0 0.0
      %197 = vmatpush1.msra.mxu0 0.0
      %198 = vmatprep.mubr.f32.mxu0 0.0
      %199 = vmatmul.mubr.f32.gmra.mrb[0].mxu0 %v110
      %v200 = vpop.f32.mrb[0].mxu0
      %v201 = vadd.f32 %v132, %v200
      %v202 = vpop.f32.mrb[0].mxu0
      %203 = vdwg.mxu0
      %v204 = vmul.f32 %v201, %v201
      %vm205 = vcmask 1041408
      %v206 = vsel %vm205, %v204, 0.0
      %207 = vadd.xlane.f32.xlu0 %v206
      %v208 = vpop.xlane.xlu0 %207
      %v209 = vadd.f32 %v208, 1e-12
      %v210 = vrsqrt.pop %v209
      %v211 = vmul.f32 %v209, %v210
      %vm212 = vcmp.eq.f32.partialorder %v209, inf
      %v213 = vsel %vm212, %v209, %v211
      %vm214 = vcmp.eq.f32.partialorder %v209, 0.0
      %v215 = vand.u32 %v209, 2147483648
      %v216 = vsel %vm214, %v215, %v213
      %v217 = vrcp.pop %v216
      %v218 = vmul.f32 %v201, %v217
      %219 = vst [vmem:[#allocation7] sm:$0x3] %v218
    $region29: #{tpu_custom_call.1} parent=1 // pred_fallthru
      _
    // Predicated region
    $region30: #{tpu_custom_call.1} parent=1 // pred_check
      _
    $region31: #{tpu_custom_call.1} parent=1 // pred_check_branch
      %221 = sbr.rel (0) target = $region33
    $region32: #{tpu_custom_call.1} parent=1 // pred_region
      %s223 = ssub.s32 32, 32
      %224 = vsyncadd [#allocation6], %s223
      %s226 = sshll.u32 [#allocation7], 4
      %s227 = int_to_ptr.vmem [resolvable:$true] %s226
      %229 = dma.vmem_to_hbm [thread:$0]  %s227, 32, %s4, [#allocation6]
    $region33: #{tpu_custom_call.1} parent=1 // pred_fallthru
      _
    // Predicated region
    $region34: #{tpu_custom_call.1} parent=1 // pred_check
      _
    $region35: #{tpu_custom_call.1} parent=1 // pred_check_branch
      %231 = sbr.rel (0) target = $region37
    $region36: #{tpu_custom_call.1} parent=1 // pred_region
      %232 = dma.done [#allocation6], 32
    $region37: #{tpu_custom_call.1} parent=1 // pred_fallthru
      _
    %233 = vsyncpa [#allocation5], 1
    %234 = vsyncpa [#allocation6], 1

</llo_original>
